<compile_context>
chip_gen: v7x
topology: tpu7x:2x2x1
jax: 0.10.0
libtpu: 0.0.40
codegen_flags: <defaults>
</compile_context>

<pallas_src>
import functools

import jax
import jax.numpy as jnp
from jax.experimental import pallas as pl
from jax.experimental.pallas import tpu as pltpu


def _round_up(x, m):
    return (x + m - 1) // m * m


def _fused_conv_bn_lrelu_kernel(x_ref, halo_ref, w_ref, scale_ref, shift_ref, o_ref,
                                *, tap_offsets, ts):
    # x_ref:     (1, Cin_p, ts)     bf16  main spatial tile (flat, padded-row layout, stride Wp)
    # halo_ref:  (1, Cin_p, halo)   bf16  next `halo` flat positions (conv halo for this tile)
    # w_ref:     (Cout_p, 9*Cin_p)  bf16  conv weights, contraction index = tap*Cin_p + cin
    # scale_ref: (Cout_p, 1)        f32   gamma / sqrt(var + eps)
    # shift_ref: (Cout_p, 1)        f32   beta - mean * scale
    # o_ref:     (1, Cout_p, ts)    f32   lane-dense (Cout, spatial) output tile
    xt = jnp.concatenate([x_ref[0, :, :], halo_ref[0, :, :]], axis=1)   # (Cin_p, ts + halo)
    # Stack the 9 shifted tap views along the contraction dim -> ONE fat MXU dot (K = 9*Cin_p).
    rhs = jnp.concatenate([xt[:, off:off + ts] for off in tap_offsets], axis=0)
    acc = jnp.dot(w_ref[...], rhs, preferred_element_type=jnp.float32)  # (Cout_p, ts) f32
    y = acc * scale_ref[...] + shift_ref[...]                           # BN (eval) in f32
    o_ref[0, :, :] = jnp.where(y > 0, y, 0.2 * y)                       # LeakyReLU(0.2)


def conv_bn_lrelu(x_nchw, weight, gamma, beta, run_mean, run_var, *, eps=1e-3, ts_cap=4096):
    """BasicConv2d forward (inference BN): Conv2d(3x3, pad=1, bias=False) -> BN -> LeakyReLU(0.2)."""
    N, Cin, H, W = x_nchw.shape
    Cout, Cin_w, KH, KW = weight.shape
    assert (KH, KW) == (3, 3) and Cin_w == Cin

    Hp, Wp = H + 2, W + 2
    cin_p = _round_up(Cin, 16)       # bf16 sublane pack = 16 -> tile-aligned input/rhs sublanes
    cout_p = _round_up(Cout, 8)      # f32 output sublane = 8 (keeps output HBM writes lean)

    # ---- spatial tiling over the flat padded-row layout (stride Wp) ----
    spatial = H * Wp                               # useful flat output extent per sample
    off_max = 2 * Wp + 2                           # largest tap offset (kh=2, kw=2)
    halo = _round_up(off_max, 128)                 # halo block width (lane granularity)
    # >=2 spatial tiles per sample for pipeline depth / 2-TC balance at small N; cap the tile so
    # per-step blocks stay small vs v7x's 64 MiB VMEM even at large Cin (bigger images just get
    # more grid steps, which is what v5e/v6e's 128 MiB parts want anyway).
    n_t = max(2, pl.cdiv(spatial, ts_cap))
    ts = _round_up(pl.cdiv(spatial, n_t), halo)    # tile width, multiple of `halo` (and 128)
    n_tiles = pl.cdiv(spatial, ts)
    m_total = n_tiles * ts                         # total flat output length (pre-trim)
    sp_p = m_total + halo                          # flat input length incl. halo slack
    hb = ts // halo                                # halo blocks per tile (exact)

    # ---- input: zero-pad channels/H/W, flatten spatial, bf16 (one fused XLA pass) ----
    # TODO(synk): read raw NCHW f32 directly from HBM (pl.ANY + in-kernel DMA/zero-pad) to drop
    # this extra padded-copy HBM round trip; needs an in-kernel row->flat relayout.
    x_pad = jnp.pad(x_nchw, ((0, 0), (0, cin_p - Cin), (1, 1), (1, 1)))       # (N, Cin_p, Hp, Wp)
    x_flat = x_pad.reshape(N, cin_p, Hp * Wp)
    x_flat = jnp.pad(x_flat, ((0, 0), (0, 0), (0, sp_p - Hp * Wp))).astype(jnp.bfloat16)

    # ---- weights: taps stacked along contraction dim, K index = tap*Cin_p + cin, bf16 ----
    w_taps = jnp.transpose(weight, (2, 3, 0, 1)).reshape(KH * KW, Cout, Cin)   # tap = kh*3 + kw
    w_taps = jnp.pad(w_taps, ((0, 0), (0, cout_p - Cout), (0, cin_p - Cin)))
    w_mat = jnp.transpose(w_taps, (1, 0, 2)).reshape(cout_p, KH * KW * cin_p).astype(jnp.bfloat16)

    # ---- BN (eval): scale/shift applied in the f32 epilogue (raw bf16 conv weights above) ----
    scale = gamma / jnp.sqrt(run_var + eps)
    shift = beta - run_mean * scale
    scale = jnp.pad(scale, (0, cout_p - Cout)).reshape(cout_p, 1).astype(jnp.float32)
    shift = jnp.pad(shift, (0, cout_p - Cout)).reshape(cout_p, 1).astype(jnp.float32)

    # flat offset of tap (kh, kw): output flat pos m = h*Wp + w reads padded pos m + kh*Wp + kw
    tap_offsets = tuple(kh * Wp + kw for kh in range(KH) for kw in range(KW))

    kernel = functools.partial(_fused_conv_bn_lrelu_kernel, tap_offsets=tap_offsets, ts=ts)

    out = pl.pallas_call(
        kernel,
        out_shape=jax.ShapeDtypeStruct((N, cout_p, m_total), jnp.float32),
        grid_spec=pltpu.PrefetchScalarGridSpec(
            num_scalar_prefetch=0,
            grid=(N, n_tiles),                              # independent tiles -> both parallel
            in_specs=[
                pl.BlockSpec((1, cin_p, ts), lambda n, s: (n, 0, s)),
                pl.BlockSpec((1, cin_p, halo), lambda n, s: (n, 0, (s + 1) * hb)),
                pl.BlockSpec((cout_p, KH * KW * cin_p), lambda n, s: (0, 0)),
                pl.BlockSpec((cout_p, 1), lambda n, s: (0, 0)),
                pl.BlockSpec((cout_p, 1), lambda n, s: (0, 0)),
            ],
            out_specs=pl.BlockSpec((1, cout_p, ts), lambda n, s: (n, 0, s)),
        ),
        compiler_params=pltpu.CompilerParams(
            dimension_semantics=("parallel", "parallel"),
            vmem_limit_bytes=32 * 1024 * 1024,              # tiny blocks; fits v5e/v6e/v7x
        ),
    )(x_flat, x_flat, w_mat, scale, shift)

    # (N, Cout_p, m_total) -> NCHW: drop channel padding, last-tile tail and the 2 pad cols/row.
    # TODO(synk): a fully packed (H*W) in-kernel store would need per-row lane re-packing, which
    # costs more than this single XLA trim at these widths.
    out = out[:, :Cout, :H * Wp].reshape(N, Cout, H, Wp)[:, :, :, :W]
    return out


if __name__ == "__main__":
    # BasicConv2d(in_channels=4, out_channels=8, kernel_size=3, padding=1)
    N, Cin, H, W = 2, 4, 16, 16
    Cout, KH, KW = 8, 3, 3

    key = jax.random.PRNGKey(0)
    kx, kw_, kg, kb, km, kv = jax.random.split(key, 6)
    x = jax.random.normal(kx, (N, Cin, H, W), dtype=jnp.float32)
    weight = jax.random.normal(kw_, (Cout, Cin, KH, KW), dtype=jnp.float32) * 0.1
    gamma = jax.random.normal(kg, (Cout,), dtype=jnp.float32) * 0.1 + 1.0
    beta = jax.random.normal(kb, (Cout,), dtype=jnp.float32) * 0.1
    run_mean = jax.random.normal(km, (Cout,), dtype=jnp.float32) * 0.1
    run_var = jax.random.uniform(kv, (Cout,), dtype=jnp.float32, minval=0.5, maxval=1.5)

    fwd = jax.jit(conv_bn_lrelu)
    out = jax.block_until_ready(fwd(x, weight, gamma, beta, run_mean, run_var))

    # pure-JAX f32 reference (BN eval mode)
    ref = jax.lax.conv_general_dilated(
        x, weight, window_strides=(1, 1), padding=((1, 1), (1, 1)),
        dimension_numbers=("NCHW", "OIHW", "NCHW"))
    s = gamma / jnp.sqrt(run_var + 1e-3)
    ref = ref * s[None, :, None, None] + (beta - run_mean * s)[None, :, None, None]
    ref = jnp.where(ref > 0, ref, 0.2 * ref)

    # bf16 activations/weights in the kernel -> looser tolerance than the f32 reference
    err = float(jnp.max(jnp.abs(out - ref)))
    assert out.shape == ref.shape, (out.shape, ref.shape)
    assert jnp.allclose(out, ref, atol=5e-2, rtol=5e-2), err

    print("KERNEL_OK")
</pallas_src>

<mosaic_0001>
module attributes {stable_mosaic.version = 11 : i64} {
  func.func @_fused_conv_bn_lrelu_kernel(%arg0: i32, %arg1: i32, %arg2: memref<1x16x256xbf16, #tpu.memory_space<vmem>>, %arg3: memref<1x16x128xbf16, #tpu.memory_space<vmem>>, %arg4: memref<8x144xbf16, #tpu.memory_space<vmem>>, %arg5: memref<8x1xf32, #tpu.memory_space<vmem>>, %arg6: memref<8x1xf32, #tpu.memory_space<vmem>>, %arg7: memref<1x8x256xf32, #tpu.memory_space<vmem>>) attributes {dimension_semantics = [#tpu.dimension_semantics<parallel>, #tpu.dimension_semantics<parallel>], iteration_bounds = array<i64: 2, 2>, scalar_prefetch = 0 : i64, scratch_operands = 0 : i64, tpu.core_type = #tpu.core_type<tc>, window_params = [{transform_indices = @transform_0, window_bounds = array<i64: 1, 16, 256>}, {transform_indices = @transform_1, window_bounds = array<i64: 1, 16, 128>}, {pipeline_mode = #tpu.pipeline_mode<synchronous>, transform_indices = @transform_2, window_bounds = array<i64: 8, 144>}, {pipeline_mode = #tpu.pipeline_mode<synchronous>, transform_indices = @transform_3, window_bounds = array<i64: 8, 1>}, {pipeline_mode = #tpu.pipeline_mode<synchronous>, transform_indices = @transform_4, window_bounds = array<i64: 8, 1>}, {transform_indices = @transform_5, window_bounds = array<i64: 1, 8, 256>}]} {
    %c0 = arith.constant 0 : index
    %c0_0 = arith.constant 0 : index
    %c0_1 = arith.constant 0 : index
    %0 = vector.load %arg2[%c0, %c0_0, %c0_1] : memref<1x16x256xbf16, #tpu.memory_space<vmem>>, vector<1x16x256xbf16>
    %1 = vector.shape_cast %0 : vector<1x16x256xbf16> to vector<16x256xbf16>
    %c0_2 = arith.constant 0 : index
    %c0_3 = arith.constant 0 : index
    %c0_4 = arith.constant 0 : index
    %2 = vector.load %arg3[%c0_2, %c0_3, %c0_4] : memref<1x16x128xbf16, #tpu.memory_space<vmem>>, vector<1x16x128xbf16>
    %3 = vector.shape_cast %2 : vector<1x16x128xbf16> to vector<16x128xbf16>
    %4 = tpu.concatenate %1, %3 in 1 : vector<16x256xbf16>, vector<16x128xbf16> -> vector<16x384xbf16>
    %5 = vector.extract_strided_slice %4 {offsets = [0, 0], sizes = [16, 256], strides = [1, 1]} : vector<16x384xbf16> to vector<16x256xbf16>
    %6 = vector.extract_strided_slice %4 {offsets = [0, 1], sizes = [16, 256], strides = [1, 1]} : vector<16x384xbf16> to vector<16x256xbf16>
    %7 = vector.extract_strided_slice %4 {offsets = [0, 2], sizes = [16, 256], strides = [1, 1]} : vector<16x384xbf16> to vector<16x256xbf16>
    %8 = vector.extract_strided_slice %4 {offsets = [0, 18], sizes = [16, 256], strides = [1, 1]} : vector<16x384xbf16> to vector<16x256xbf16>
    %9 = vector.extract_strided_slice %4 {offsets = [0, 19], sizes = [16, 256], strides = [1, 1]} : vector<16x384xbf16> to vector<16x256xbf16>
    %10 = vector.extract_strided_slice %4 {offsets = [0, 20], sizes = [16, 256], strides = [1, 1]} : vector<16x384xbf16> to vector<16x256xbf16>
    %11 = vector.extract_strided_slice %4 {offsets = [0, 36], sizes = [16, 256], strides = [1, 1]} : vector<16x384xbf16> to vector<16x256xbf16>
    %12 = vector.extract_strided_slice %4 {offsets = [0, 37], sizes = [16, 256], strides = [1, 1]} : vector<16x384xbf16> to vector<16x256xbf16>
    %13 = vector.extract_strided_slice %4 {offsets = [0, 38], sizes = [16, 256], strides = [1, 1]} : vector<16x384xbf16> to vector<16x256xbf16>
    %14 = tpu.concatenate %5, %6, %7, %8, %9, %10, %11, %12, %13 in 0 : vector<16x256xbf16>, vector<16x256xbf16>, vector<16x256xbf16>, vector<16x256xbf16>, vector<16x256xbf16>, vector<16x256xbf16>, vector<16x256xbf16>, vector<16x256xbf16>, vector<16x256xbf16> -> vector<144x256xbf16>
    %c0_5 = arith.constant 0 : index
    %c0_6 = arith.constant 0 : index
    %15 = vector.load %arg4[%c0_5, %c0_6] : memref<8x144xbf16, #tpu.memory_space<vmem>>, vector<8x144xbf16>
    %cst = arith.constant dense<0.000000e+00> : vector<8x256xf32>
    %16 = tpu.matmul %15, %14, %cst {dimension_numbers = #tpu.dot_dimension_numbers<[1], [0], [0], [1], [0, 0, 1, 1], [], []>} : vector<8x144xbf16>, vector<144x256xbf16>, vector<8x256xf32> -> vector<8x256xf32>
    %c0_7 = arith.constant 0 : index
    %c0_8 = arith.constant 0 : index
    %17 = vector.load %arg5[%c0_7, %c0_8] : memref<8x1xf32, #tpu.memory_space<vmem>>, vector<8x1xf32>
    %18 = vector.broadcast %17 : vector<8x1xf32> to vector<8x256xf32>
    %19 = arith.mulf %16, %18 : vector<8x256xf32>
    %c0_9 = arith.constant 0 : index
    %c0_10 = arith.constant 0 : index
    %20 = vector.load %arg6[%c0_9, %c0_10] : memref<8x1xf32, #tpu.memory_space<vmem>>, vector<8x1xf32>
    %21 = vector.broadcast %20 : vector<8x1xf32> to vector<8x256xf32>
    %22 = arith.addf %19, %21 : vector<8x256xf32>
    %cst_11 = arith.constant 0.000000e+00 : f32
    %23 = vector.broadcast %cst_11 : f32 to vector<8x256xf32>
    %24 = arith.cmpf ogt, %22, %23 : vector<8x256xf32>
    %cst_12 = arith.constant 2.000000e-01 : f32
    %25 = vector.broadcast %cst_12 : f32 to vector<8x256xf32>
    %26 = arith.mulf %25, %22 : vector<8x256xf32>
    %27 = arith.select %24, %22, %26 : vector<8x256xi1>, vector<8x256xf32>
    %c0_13 = arith.constant 0 : index
    %c0_14 = arith.constant 0 : index
    %c0_15 = arith.constant 0 : index
    %28 = vector.load %arg7[%c0_13, %c0_14, %c0_15] : memref<1x8x256xf32, #tpu.memory_space<vmem>>, vector<1x8x256xf32>
    %29 = vector.shape_cast %28 : vector<1x8x256xf32> to vector<8x256xf32>
    %30 = vector.shape_cast %27 : vector<8x256xf32> to vector<1x8x256xf32>
    tpu.vector_store %arg7[%c0_13, %c0_14, %c0_15], %30 {strides = array<i32>} : memref<1x8x256xf32, #tpu.memory_space<vmem>>, vector<1x8x256xf32>,
    return
  }
  func.func @transform_0(%arg0: i32, %arg1: i32) -> (i32, i32, i32) {
    %c0_i32 = arith.constant 0 : i32
    %c0_i32_0 = arith.constant 0 : i32
    return %arg0, %c0_i32, %arg1 : i32, i32, i32
  }
  func.func @transform_1(%arg0: i32, %arg1: i32) -> (i32, i32, i32) {
    %c1_i32 = arith.constant 1 : i32
    %0 = arith.addi %arg1, %c1_i32 : i32
    %c2_i32 = arith.constant 2 : i32
    %1 = arith.muli %0, %c2_i32 : i32
    %c0_i32 = arith.constant 0 : i32
    %c0_i32_0 = arith.constant 0 : i32
    return %arg0, %c0_i32, %1 : i32, i32, i32
  }
  func.func @transform_2(%arg0: i32, %arg1: i32) -> (i32, i32) {
    %c0_i32 = arith.constant 0 : i32
    %c0_i32_0 = arith.constant 0 : i32
    %c0_i32_1 = arith.constant 0 : i32
    return %c0_i32, %c0_i32_0 : i32, i32
  }
  func.func @transform_3(%arg0: i32, %arg1: i32) -> (i32, i32) {
    %c0_i32 = arith.constant 0 : i32
    %c0_i32_0 = arith.constant 0 : i32
    %c0_i32_1 = arith.constant 0 : i32
    return %c0_i32, %c0_i32_0 : i32, i32
  }
  func.func @transform_4(%arg0: i32, %arg1: i32) -> (i32, i32) {
    %c0_i32 = arith.constant 0 : i32
    %c0_i32_0 = arith.constant 0 : i32
    %c0_i32_1 = arith.constant 0 : i32
    return %c0_i32, %c0_i32_0 : i32, i32
  }
  func.func @transform_5(%arg0: i32, %arg1: i32) -> (i32, i32, i32) {
    %c0_i32 = arith.constant 0 : i32
    %c0_i32_0 = arith.constant 0 : i32
    return %arg0, %c0_i32, %arg1 : i32, i32, i32
  }
}

</mosaic_0001>

<llo_original>
// kernel: conv_bn_lrelu.1
$region0: #{conv_bn_lrelu.1}
  #allocation0 [shape = 'u32[]', space=smem, size = 0x4, offset = 0x4, fixed_abs, tag = 'smem constant byte address 0x4 - core index']
  #allocation1 [shape = 'u32[144,128]{1,0:T(1,128)}', space=vmem, size = 0x12000, scoped, tag = 'internal scratch']
  %s0 = inlined_call_operand.vmem [shape: bf16[2,16,640], index: 0, kind: input, shape index: {}, may-alias: {0,1}]
  %s1 = inlined_call_operand.vmem [shape: bf16[2,16,640], index: 1, kind: input, shape index: {}, may-alias: {0,1}]
  %s2 = inlined_call_operand.vmem [shape: bf16[8,144], index: 2, kind: input, shape index: {}]
  %s3 = inlined_call_operand.vmem [shape: f32[8,1], index: 3, kind: input, shape index: {}]
  %s4 = inlined_call_operand.vmem [shape: f32[8,1], index: 4, kind: input, shape index: {}]
  %s5 = inlined_call_operand.vmem [shape: f32[2,8,512], index: 5, kind: output, shape index: {}]
  %s6 = sld [smem:[#allocation0]]
  $region160: #{conv_bn_lrelu.1} parent=0
    _
  %s8 = ssub.s32 1, %s6
  %s9 = scalar_select 0, %s8, %s6
  $region1: #{conv_bn_lrelu.1} parent=0
    #allocation2 [shape = 'u8[16384]{0}', space=vmem, size = 0x4000, scoped, tag = 'input window, operand 0']
    #allocation3 [shape = 'u8[8192]{0}', space=vmem, size = 0x2000, scoped, tag = 'input window, operand 1']
    loop: start=0, step=1, limit=6
    $region2: #{conv_bn_lrelu.1} parent=1 // loop_pre_header
      _
    $region3: #{conv_bn_lrelu.1} parent=1 // loop_header
      %s11 = sphi 0, %s15
      %p12 = scmp.ge.s32.totalorder %s11, 6
      %s18 = sphi 0, %s30
      %s19 = sphi 0, %s26
      %s20 = sphi 0, %s18
      %s21 = sphi 0, %s19
      %s22 = sphi 0, %s20
      %s23 = sphi 0, %s21
      %s35 = sphi 0, %s37
      %s38 = sphi 0, %s35
      %s39 = sphi 0, %s38
      %s55 = sphi 0, %s39
      %s67 = sphi 0, %s69
      %s70 = sphi 0, %s67
      %s71 = sphi 0, %s70
      %s87 = sphi 0, %s71
      %s91 = sphi 0, %s91
      %s93 = sphi 0, %s91
      %s94 = sphi 0, %s93
      %s108 = sphi 0, %s94
      %s112 = sphi 0, %s112
      %s114 = sphi 0, %s112
      %s115 = sphi 0, %s114
      %s129 = sphi 0, %s115
      %s133 = sphi 0, %s133
      %s135 = sphi 0, %s133
      %s136 = sphi 0, %s135
      %s150 = sphi 0, %s136
      %s158 = sphi 0, %s160
      %s161 = sphi 0, %s158
      %s162 = sphi 0, %s161
      %s178 = sphi 0, %s162
    $region4: #{conv_bn_lrelu.1} parent=1 // loop_header_branch
      %14 = sbr.rel (%p12) target = $region8
    $region5: #{conv_bn_lrelu.1} parent=1 // loop_body
      %s16 = ssub.s32 %s11, 1
      %s17 = ssub.s32 %s11, 2
      %s24 = sadd.s32 1, %s19
      %p25 = scmp.ge.s32.totalorder %s24, 2
      %s26 = scalar_select %p25, 0, %s24
      %s27 = sadd.s32 1, %s18
      %s28 = scalar_select %p25, %s27, %s18
      %p29 = scmp.ge.s32.totalorder %s28, 2
      %s30 = scalar_select %p29, 0, %s28
      %s31 = ssub.s32 %s18, %s30
      %s32 = ssub.s32 %s19, %s26
      %s33 = sor.u32 %s31, %s32
      %p34 = scmp.eq.s32.totalorder %s33, 0
      %s36 = sadd.s32 %s35, 1
      %s37 = scalar_select %p34, %s35, %s36
      %p40 = pneg %p34
      %p41 = scmp.eq.s32.totalorder %s11, 3
      %p42 = por %p40, %p41
      %p43 = scmp.ne.s32.totalorder %s35, %s38
      %p44 = scmp.eq.s32.totalorder %s11, 0
      %p45 = por %p43, %p44
      %p46 = scmp.ne.s32.totalorder %s35, %s38
      %p47 = scmp.eq.s32.totalorder %s16, 3
      %p48 = por %p46, %p47
      %p49 = scmp.ne.s32.totalorder %s38, %s39
      %p50 = scmp.eq.s32.totalorder %s16, 0
      %p51 = por %p49, %p50
      %p52 = scmp.ne.s32.totalorder %s38, %s39
      %p53 = scmp.eq.s32.totalorder %s17, 3
      %p54 = por %p52, %p53
      %p56 = scmp.ne.s32.totalorder %s39, %s55
      %p57 = scmp.eq.s32.totalorder %s17, 0
      %p58 = por %p56, %p57
      %s59 = sadd.s32 %s19, 1
      %s60 = smul.u32 %s59, 2
      %s61 = sadd.s32 %s26, 1
      %s62 = smul.u32 %s61, 2
      %s63 = ssub.s32 %s18, %s30
      %s64 = ssub.s32 %s60, %s62
      %s65 = sor.u32 %s63, %s64
      %p66 = scmp.eq.s32.totalorder %s65, 0
      %s68 = sadd.s32 %s67, 1
      %s69 = scalar_select %p66, %s67, %s68
      %p72 = pneg %p66
      %p73 = scmp.eq.s32.totalorder %s11, 3
      %p74 = por %p72, %p73
      %p75 = scmp.ne.s32.totalorder %s67, %s70
      %p76 = scmp.eq.s32.totalorder %s11, 0
      %p77 = por %p75, %p76
      %p78 = scmp.ne.s32.totalorder %s67, %s70
      %p79 = scmp.eq.s32.totalorder %s16, 3
      %p80 = por %p78, %p79
      %p81 = scmp.ne.s32.totalorder %s70, %s71
      %p82 = scmp.eq.s32.totalorder %s16, 0
      %p83 = por %p81, %p82
      %p84 = scmp.ne.s32.totalorder %s70, %s71
      %p85 = scmp.eq.s32.totalorder %s17, 3
      %p86 = por %p84, %p85
      %p88 = scmp.ne.s32.totalorder %s71, %s87
      %p89 = scmp.eq.s32.totalorder %s17, 0
      %p90 = por %p88, %p89
      %s92 = sadd.s32 %s91, 1
      %p95 = scmp.eq.s32.totalorder %s11, 3
      %p96 = scmp.ne.s32.totalorder %s91, %s93
      %p97 = scmp.eq.s32.totalorder %s11, 0
      %p98 = por %p96, %p97
      %p99 = scmp.ne.s32.totalorder %s91, %s93
      %p100 = scmp.eq.s32.totalorder %s16, 3
      %p101 = por %p99, %p100
      %p102 = scmp.ne.s32.totalorder %s93, %s94
      %p103 = scmp.eq.s32.totalorder %s16, 0
      %p104 = por %p102, %p103
      %p105 = scmp.ne.s32.totalorder %s93, %s94
      %p106 = scmp.eq.s32.totalorder %s17, 3
      %p107 = por %p105, %p106
      %p109 = scmp.ne.s32.totalorder %s94, %s108
      %p110 = scmp.eq.s32.totalorder %s17, 0
      %p111 = por %p109, %p110
      %s113 = sadd.s32 %s112, 1
      %p116 = scmp.eq.s32.totalorder %s11, 3
      %p117 = scmp.ne.s32.totalorder %s112, %s114
      %p118 = scmp.eq.s32.totalorder %s11, 0
      %p119 = por %p117, %p118
      %p120 = scmp.ne.s32.totalorder %s112, %s114
      %p121 = scmp.eq.s32.totalorder %s16, 3
      %p122 = por %p120, %p121
      %p123 = scmp.ne.s32.totalorder %s114, %s115
      %p124 = scmp.eq.s32.totalorder %s16, 0
      %p125 = por %p123, %p124
      %p126 = scmp.ne.s32.totalorder %s114, %s115
      %p127 = scmp.eq.s32.totalorder %s17, 3
      %p128 = por %p126, %p127
      %p130 = scmp.ne.s32.totalorder %s115, %s129
      %p131 = scmp.eq.s32.totalorder %s17, 0
      %p132 = por %p130, %p131
      %s134 = sadd.s32 %s133, 1
      %p137 = scmp.eq.s32.totalorder %s11, 3
      %p138 = scmp.ne.s32.totalorder %s133, %s135
      %p139 = scmp.eq.s32.totalorder %s11, 0
      %p140 = por %p138, %p139
      %p141 = scmp.ne.s32.totalorder %s133, %s135
      %p142 = scmp.eq.s32.totalorder %s16, 3
      %p143 = por %p141, %p142
      %p144 = scmp.ne.s32.totalorder %s135, %s136
      %p145 = scmp.eq.s32.totalorder %s16, 0
      %p146 = por %p144, %p145
      %p147 = scmp.ne.s32.totalorder %s135, %s136
      %p148 = scmp.eq.s32.totalorder %s17, 3
      %p149 = por %p147, %p148
      %p151 = scmp.ne.s32.totalorder %s136, %s150
      %p152 = scmp.eq.s32.totalorder %s17, 0
      %p153 = por %p151, %p152
      %s154 = ssub.s32 %s18, %s30
      %s155 = ssub.s32 %s19, %s26
      %s156 = sor.u32 %s154, %s155
      %p157 = scmp.eq.s32.totalorder %s156, 0
      %s159 = sadd.s32 %s158, 1
      %s160 = scalar_select %p157, %s158, %s159
      %p163 = pneg %p157
      %p164 = scmp.eq.s32.totalorder %s11, 3
      %p165 = por %p163, %p164
      %p166 = scmp.ne.s32.totalorder %s158, %s161
      %p167 = scmp.eq.s32.totalorder %s11, 0
      %p168 = por %p166, %p167
      %p169 = scmp.ne.s32.totalorder %s158, %s161
      %p170 = scmp.eq.s32.totalorder %s16, 3
      %p171 = por %p169, %p170
      %p172 = scmp.ne.s32.totalorder %s161, %s162
      %p173 = scmp.eq.s32.totalorder %s16, 0
      %p174 = por %p172, %p173
      %p175 = scmp.ne.s32.totalorder %s161, %s162
      %p176 = scmp.eq.s32.totalorder %s17, 3
      %p177 = por %p175, %p176
      %p179 = scmp.ne.s32.totalorder %s162, %s178
      %p180 = scmp.eq.s32.totalorder %s17, 0
      %p181 = por %p179, %p180
      %p182 = scmp.le.s32.totalorder 1, %s11
      %p183 = scmp.lt.s32.totalorder %s11, 5
      %p184 = pnand %p182, %p183
      %p185 = pneg %p184
      // Predicated region
      $region9: #{conv_bn_lrelu.1} parent=5 // pred_check
        _
      $region10: #{conv_bn_lrelu.1} parent=5 // pred_check_branch
        %187 = sbr.rel (%p184) target = $region12
      $region11: #{conv_bn_lrelu.1} parent=5 // pred_region
        %s188 = ssub.s32 %s11, 1
        // Predicated region
        $region13: #{conv_bn_lrelu.1} parent=11 // pred_check
          %p189 = pneg %p104
        $region14: #{conv_bn_lrelu.1} parent=11 // pred_check_branch
          %191 = sbr.rel (%p189) target = $region16
        $region15: #{conv_bn_lrelu.1} parent=11 // pred_region
          _
        $region16: #{conv_bn_lrelu.1} parent=11 // pred_fallthru
          _
        // Predicated region
        $region17: #{conv_bn_lrelu.1} parent=11 // pred_check
          %p192 = pneg %p125
        $region18: #{conv_bn_lrelu.1} parent=11 // pred_check_branch
          %194 = sbr.rel (%p192) target = $region20
        $region19: #{conv_bn_lrelu.1} parent=11 // pred_region
          _
        $region20: #{conv_bn_lrelu.1} parent=11 // pred_fallthru
          _
        // Predicated region
        $region21: #{conv_bn_lrelu.1} parent=11 // pred_check
          %p195 = pneg %p146
        $region22: #{conv_bn_lrelu.1} parent=11 // pred_check_branch
          %197 = sbr.rel (%p195) target = $region24
        $region23: #{conv_bn_lrelu.1} parent=11 // pred_region
          _
        $region24: #{conv_bn_lrelu.1} parent=11 // pred_fallthru
          _
      $region12: #{conv_bn_lrelu.1} parent=5 // pred_fallthru
        _
      %p198 = scmp.lt.s32.totalorder %s11, 4
      // Predicated region
      $region25: #{conv_bn_lrelu.1} parent=5 // pred_check
        %p199 = pneg %p198
      $region26: #{conv_bn_lrelu.1} parent=5 // pred_check_branch
        %201 = sbr.rel (%p199) target = $region28
      $region27: #{conv_bn_lrelu.1} parent=5 // pred_region
        // Predicated region
        $region29: #{conv_bn_lrelu.1} parent=27 // pred_check
          %p202 = pneg %p45
        $region30: #{conv_bn_lrelu.1} parent=27 // pred_check_branch
          %204 = sbr.rel (%p202) target = $region32
        $region31: #{conv_bn_lrelu.1} parent=27 // pred_region
          %s205 = sand.u32 %s35, 1
          %s206 = sand.u32 %s35, 1
          %s207 = smul.addr %s206, 16
          %s208 = scalar_lea.vmem [#allocation2], %s207
          %s209 = smul.u32 2, %s19
          %s210 = ssub.s32 5, %s209
          %p211 = scmp.lt.s32.totalorder %s210, 2
          %s212 = scalar_select %p211, %s210, 2
          %s213 = smul.u32 128, %s212
          %p214 = scmp.ne.s32.totalorder 0, %s213
          %s215 = smul.addr %s18, 10
          %s216 = sadd.s32 %s209, %s215
          %s217 = smul.addr %s216, 4
          %s218 = scalar_lea.vmem %s0, %s217
          %s219 = smul.u32 %s212, 4
          // Predicated region
          $region33: #{conv_bn_lrelu.1} parent=31 // pred_check
            %p220 = pneg %p214
          $region34: #{conv_bn_lrelu.1} parent=31 // pred_check_branch
            %222 = sbr.rel (%p220) target = $region36
          $region35: #{conv_bn_lrelu.1} parent=31 // pred_region
            %p223 = scmp.lt.u32.totalorder %s219, 8
            %p224 = pneg %p223
            // Predicated region
            $region37: #{conv_bn_lrelu.1} parent=35 // pred_check
              _
            $region38: #{conv_bn_lrelu.1} parent=35 // pred_check_branch
              %226 = sbr.rel (%p223) target = $region40
            $region39: #{conv_bn_lrelu.1} parent=35 // pred_region
              %s243 = sand.u32 %s219, 7
              %p244 = scmp.eq.s32.totalorder %s243, 0
              // Predicated region
              $region52: #{conv_bn_lrelu.1} parent=39 // pred_check
                %p245 = pneg %p244
              $region53: #{conv_bn_lrelu.1} parent=39 // pred_check_branch
                %247 = sbr.rel (%p245) target = $region55
              $region54: #{conv_bn_lrelu.1} parent=39 // pred_region
                %s248 = sshrl.u32 %s219, 3
                %s249 = sshrl.u32 %s248, 5
                // While loop
                $region56: #{conv_bn_lrelu.1} parent=54 // loop_pre_header
                  _
                $region57: #{conv_bn_lrelu.1} parent=54 // loop_header
                  %s253 = sphi 0, %s255
                  %p254 = scmp.ge.s32.totalorder %s253, %s249
                  %s258 = sphi 0, %s391
                  %s259 = sphi %s218, %s394
                  %s260 = sphi %s208, %s395
                $region58: #{conv_bn_lrelu.1} parent=54 // loop_header_branch
                  %257 = sbr.rel (%p254) target = $region62
                $region59: #{conv_bn_lrelu.1} parent=54 // loop_body
                  %v261 = vld [vmem:[%s259] sm:$0xff]
                  %262 = vst [vmem:[%s260] sm:$0xff] %v261
                  %v263 = vld [vmem:[%s259 + $0x8] sm:$0xff]
                  %264 = vst [vmem:[%s260 + $0x8] sm:$0xff] %v263
                  %v265 = vld [vmem:[%s259 + $0x10] sm:$0xff]
                  %266 = vst [vmem:[%s260 + $0x10] sm:$0xff] %v265
                  %v267 = vld [vmem:[%s259 + $0x18] sm:$0xff]
                  %268 = vst [vmem:[%s260 + $0x18] sm:$0xff] %v267
                  %v269 = vld [vmem:[%s259 + $0x20] sm:$0xff]
                  %270 = vst [vmem:[%s260 + $0x20] sm:$0xff] %v269
                  %v271 = vld [vmem:[%s259 + $0x28] sm:$0xff]
                  %272 = vst [vmem:[%s260 + $0x28] sm:$0xff] %v271
                  %v273 = vld [vmem:[%s259 + $0x30] sm:$0xff]
                  %274 = vst [vmem:[%s260 + $0x30] sm:$0xff] %v273
                  %v275 = vld [vmem:[%s259 + $0x38] sm:$0xff]
                  %276 = vst [vmem:[%s260 + $0x38] sm:$0xff] %v275
                  %v277 = vld [vmem:[%s259 + $0x40] sm:$0xff]
                  %278 = vst [vmem:[%s260 + $0x40] sm:$0xff] %v277
                  %v279 = vld [vmem:[%s259 + $0x48] sm:$0xff]
                  %280 = vst [vmem:[%s260 + $0x48] sm:$0xff] %v279
                  %v281 = vld [vmem:[%s259 + $0x50] sm:$0xff]
                  %282 = vst [vmem:[%s260 + $0x50] sm:$0xff] %v281
                  %v283 = vld [vmem:[%s259 + $0x58] sm:$0xff]
                  %284 = vst [vmem:[%s260 + $0x58] sm:$0xff] %v283
                  %v285 = vld [vmem:[%s259 + $0x60] sm:$0xff]
                  %286 = vst [vmem:[%s260 + $0x60] sm:$0xff] %v285
                  %v287 = vld [vmem:[%s259 + $0x68] sm:$0xff]
                  %288 = vst [vmem:[%s260 + $0x68] sm:$0xff] %v287
                  %v289 = vld [vmem:[%s259 + $0x70] sm:$0xff]
                  %290 = vst [vmem:[%s260 + $0x70] sm:$0xff] %v289
                  %v291 = vld [vmem:[%s259 + $0x78] sm:$0xff]
                  %292 = vst [vmem:[%s260 + $0x78] sm:$0xff] %v291
                  %v293 = vld [vmem:[%s259 + $0x80] sm:$0xff]
                  %294 = vst [vmem:[%s260 + $0x80] sm:$0xff] %v293
                  %v295 = vld [vmem:[%s259 + $0x88] sm:$0xff]
                  %296 = vst [vmem:[%s260 + $0x88] sm:$0xff] %v295
                  %v297 = vld [vmem:[%s259 + $0x90] sm:$0xff]
                  %298 = vst [vmem:[%s260 + $0x90] sm:$0xff] %v297
                  %v299 = vld [vmem:[%s259 + $0x98] sm:$0xff]
                  %300 = vst [vmem:[%s260 + $0x98] sm:$0xff] %v299
                  %v301 = vld [vmem:[%s259 + $0xa0] sm:$0xff]
                  %302 = vst [vmem:[%s260 + $0xa0] sm:$0xff] %v301
                  %v303 = vld [vmem:[%s259 + $0xa8] sm:$0xff]
                  %304 = vst [vmem:[%s260 + $0xa8] sm:$0xff] %v303
                  %v305 = vld [vmem:[%s259 + $0xb0] sm:$0xff]
                  %306 = vst [vmem:[%s260 + $0xb0] sm:$0xff] %v305
                  %v307 = vld [vmem:[%s259 + $0xb8] sm:$0xff]
                  %308 = vst [vmem:[%s260 + $0xb8] sm:$0xff] %v307
                  %v309 = vld [vmem:[%s259 + $0xc0] sm:$0xff]
                  %310 = vst [vmem:[%s260 + $0xc0] sm:$0xff] %v309
                  %v311 = vld [vmem:[%s259 + $0xc8] sm:$0xff]
                  %312 = vst [vmem:[%s260 + $0xc8] sm:$0xff] %v311
                  %v313 = vld [vmem:[%s259 + $0xd0] sm:$0xff]
                  %314 = vst [vmem:[%s260 + $0xd0] sm:$0xff] %v313
                  %v315 = vld [vmem:[%s259 + $0xd8] sm:$0xff]
                  %316 = vst [vmem:[%s260 + $0xd8] sm:$0xff] %v315
                  %v317 = vld [vmem:[%s259 + $0xe0] sm:$0xff]
                  %318 = vst [vmem:[%s260 + $0xe0] sm:$0xff] %v317
                  %v319 = vld [vmem:[%s259 + $0xe8] sm:$0xff]
                  %320 = vst [vmem:[%s260 + $0xe8] sm:$0xff] %v319
                  %v321 = vld [vmem:[%s259 + $0xf0] sm:$0xff]
                  %322 = vst [vmem:[%s260 + $0xf0] sm:$0xff] %v321
                  %v323 = vld [vmem:[%s259 + $0xf8] sm:$0xff]
                  %324 = vst [vmem:[%s260 + $0xf8] sm:$0xff] %v323
                  %v325 = vld [vmem:[%s259 + $0x14] sm:$0xff]
                  %326 = vst [vmem:[%s260 + $0x8] sm:$0xff] %v325
                  %v327 = vld [vmem:[%s259 + $0x1c] sm:$0xff]
                  %328 = vst [vmem:[%s260 + $0x10] sm:$0xff] %v327
                  %v329 = vld [vmem:[%s259 + $0x24] sm:$0xff]
                  %330 = vst [vmem:[%s260 + $0x18] sm:$0xff] %v329
                  %v331 = vld [vmem:[%s259 + $0x2c] sm:$0xff]
                  %332 = vst [vmem:[%s260 + $0x20] sm:$0xff] %v331
                  %v333 = vld [vmem:[%s259 + $0x34] sm:$0xff]
                  %334 = vst [vmem:[%s260 + $0x28] sm:$0xff] %v333
                  %v335 = vld [vmem:[%s259 + $0x3c] sm:$0xff]
                  %336 = vst [vmem:[%s260 + $0x30] sm:$0xff] %v335
                  %v337 = vld [vmem:[%s259 + $0x44] sm:$0xff]
                  %338 = vst [vmem:[%s260 + $0x38] sm:$0xff] %v337
                  %v339 = vld [vmem:[%s259 + $0x4c] sm:$0xff]
                  %340 = vst [vmem:[%s260 + $0x40] sm:$0xff] %v339
                  %v341 = vld [vmem:[%s259 + $0x54] sm:$0xff]
                  %342 = vst [vmem:[%s260 + $0x48] sm:$0xff] %v341
                  %v343 = vld [vmem:[%s259 + $0x5c] sm:$0xff]
                  %344 = vst [vmem:[%s260 + $0x50] sm:$0xff] %v343
                  %v345 = vld [vmem:[%s259 + $0x64] sm:$0xff]
                  %346 = vst [vmem:[%s260 + $0x58] sm:$0xff] %v345
                  %v347 = vld [vmem:[%s259 + $0x6c] sm:$0xff]
                  %348 = vst [vmem:[%s260 + $0x60] sm:$0xff] %v347
                  %v349 = vld [vmem:[%s259 + $0x74] sm:$0xff]
                  %350 = vst [vmem:[%s260 + $0x68] sm:$0xff] %v349
                  %v351 = vld [vmem:[%s259 + $0x7c] sm:$0xff]
                  %352 = vst [vmem:[%s260 + $0x70] sm:$0xff] %v351
                  %v353 = vld [vmem:[%s259 + $0x84] sm:$0xff]
                  %354 = vst [vmem:[%s260 + $0x78] sm:$0xff] %v353
                  %v355 = vld [vmem:[%s259 + $0x8c] sm:$0xff]
                  %356 = vst [vmem:[%s260 + $0x80] sm:$0xff] %v355
                  %v357 = vld [vmem:[%s259 + $0x94] sm:$0xff]
                  %358 = vst [vmem:[%s260 + $0x88] sm:$0xff] %v357
                  %v359 = vld [vmem:[%s259 + $0x9c] sm:$0xff]
                  %360 = vst [vmem:[%s260 + $0x90] sm:$0xff] %v359
                  %v361 = vld [vmem:[%s259 + $0xa4] sm:$0xff]
                  %362 = vst [vmem:[%s260 + $0x98] sm:$0xff] %v361
                  %v363 = vld [vmem:[%s259 + $0xac] sm:$0xff]
                  %364 = vst [vmem:[%s260 + $0xa0] sm:$0xff] %v363
                  %v365 = vld [vmem:[%s259 + $0xb4] sm:$0xff]
                  %366 = vst [vmem:[%s260 + $0xa8] sm:$0xff] %v365
                  %v367 = vld [vmem:[%s259 + $0xbc] sm:$0xff]
                  %368 = vst [vmem:[%s260 + $0xb0] sm:$0xff] %v367
                  %v369 = vld [vmem:[%s259 + $0xc4] sm:$0xff]
                  %370 = vst [vmem:[%s260 + $0xb8] sm:$0xff] %v369
                  %v371 = vld [vmem:[%s259 + $0xcc] sm:$0xff]
                  %372 = vst [vmem:[%s260 + $0xc0] sm:$0xff] %v371
                  %v373 = vld [vmem:[%s259 + $0xd4] sm:$0xff]
                  %374 = vst [vmem:[%s260 + $0xc8] sm:$0xff] %v373
                  %v375 = vld [vmem:[%s259 + $0xdc] sm:$0xff]
                  %376 = vst [vmem:[%s260 + $0xd0] sm:$0xff] %v375
                  %v377 = vld [vmem:[%s259 + $0xe4] sm:$0xff]
                  %378 = vst [vmem:[%s260 + $0xd8] sm:$0xff] %v377
                  %v379 = vld [vmem:[%s259 + $0xec] sm:$0xff]
                  %380 = vst [vmem:[%s260 + $0xe0] sm:$0xff] %v379
                  %v381 = vld [vmem:[%s259 + $0xf4] sm:$0xff]
                  %382 = vst [vmem:[%s260 + $0xe8] sm:$0xff] %v381
                  %v383 = vld [vmem:[%s259 + $0xfc] sm:$0xff]
                  %384 = vst [vmem:[%s260 + $0xf0] sm:$0xff] %v383
                  %v385 = vld [vmem:[%s259 + $0x104] sm:$0xff]
                  %386 = vst [vmem:[%s260 + $0xf8] sm:$0xff] %v385
                  %v387 = vld [vmem:[%s259 + $0x10c] sm:$0xff]
                  %388 = vst [vmem:[%s260 + $0x100] sm:$0xff] %v387
                  %s389 = sadd.s32 1, %s258
                  %p390 = scmp.ge.s32.totalorder %s389, %s249
                  %s391 = scalar_select %p390, 0, %s389
                  %s392 = smul.u32 %s391, 256
                  %s393 = smul.u32 %s391, 256
                  %s394 = scalar_lea.vmem %s218, %s392
                  %s395 = scalar_lea.vmem %s208, %s393 [#allocation2]
                $region60: #{conv_bn_lrelu.1} parent=54 // loop_footer
                  %s255 = sadd.s32 %s253, 1
                $region61: #{conv_bn_lrelu.1} parent=54 // loop_footer_branch
                  %252 = sbr.rel target = $region57
                $region62: #{conv_bn_lrelu.1} parent=54 // loop_exit
                  _
                %s396 = sshrl.u32 %s248, 5
                %s397 = sand.u32 %s248, 31
                %s398 = smul.u32 %s396, 32
                %s399 = smul.u32 128, %s398
                %s400 = sshra.s32 %s399, 4
                %s401 = scalar_lea.vmem %s218, %s400
                %s402 = smul.u32 128, %s398
                %s403 = sshra.s32 %s402, 4
                %s404 = scalar_lea.vmem %s208, %s403 [#allocation2]
                // While loop
                $region63: #{conv_bn_lrelu.1} parent=54 // loop_pre_header
                  _
                $region64: #{conv_bn_lrelu.1} parent=54 // loop_header
                  %s408 = sphi 0, %s410
                  %p409 = scmp.ge.s32.totalorder %s408, %s397
                  %s413 = sphi 0, %s422
                  %s414 = sphi %s401, %s425
                  %s415 = sphi %s404, %s426
                $region65: #{conv_bn_lrelu.1} parent=54 // loop_header_branch
                  %412 = sbr.rel (%p409) target = $region69
                $region66: #{conv_bn_lrelu.1} parent=54 // loop_body
                  %v416 = vld [vmem:[%s414] sm:$0xff]
                  %417 = vst [vmem:[%s415] sm:$0xff] %v416
                  %v418 = vld [vmem:[%s414 + $0x14] sm:$0xff]
                  %419 = vst [vmem:[%s415 + $0x8] sm:$0xff] %v418
                  %s420 = sadd.s32 1, %s413
                  %p421 = scmp.ge.s32.totalorder %s420, %s397
                  %s422 = scalar_select %p421, 0, %s420
                  %s423 = smul.u32 %s422, 8
                  %s424 = smul.u32 %s422, 8
                  %s425 = scalar_lea.vmem %s401, %s423
                  %s426 = scalar_lea.vmem %s404, %s424 [#allocation2]
                $region67: #{conv_bn_lrelu.1} parent=54 // loop_footer
                  %s410 = sadd.s32 %s408, 1
                $region68: #{conv_bn_lrelu.1} parent=54 // loop_footer_branch
                  %407 = sbr.rel target = $region64
                $region69: #{conv_bn_lrelu.1} parent=54 // loop_exit
                  _
              $region55: #{conv_bn_lrelu.1} parent=39 // pred_fallthru
                _
              %p427 = pneg %p244
              // Predicated region
              $region70: #{conv_bn_lrelu.1} parent=39 // pred_check
                _
              $region71: #{conv_bn_lrelu.1} parent=39 // pred_check_branch
                %429 = sbr.rel (%p244) target = $region73
              $region72: #{conv_bn_lrelu.1} parent=39 // pred_region
                %s430 = sand.u32 %s219, 7
                %s431 = ssub.s32 %s219, %s430
                %s432 = scalar_lea.vmem %s218, %s431
                %s433 = ssub.s32 %s219, %s430
                %s434 = scalar_lea.vmem %s208, %s433 [#allocation2]
                %s435 = sshrl.u32 %s219, 3
                %s436 = sshrl.u32 %s435, 5
                // While loop
                $region74: #{conv_bn_lrelu.1} parent=72 // loop_pre_header
                  _
                $region75: #{conv_bn_lrelu.1} parent=72 // loop_header
                  %s440 = sphi 0, %s442
                  %p441 = scmp.ge.s32.totalorder %s440, %s436
                  %s445 = sphi 0, %s578
                  %s446 = sphi %s218, %s581
                  %s447 = sphi %s208, %s582
                $region76: #{conv_bn_lrelu.1} parent=72 // loop_header_branch
                  %444 = sbr.rel (%p441) target = $region80
                $region77: #{conv_bn_lrelu.1} parent=72 // loop_body
                  %v448 = vld [vmem:[%s446] sm:$0xff]
                  %449 = vst [vmem:[%s447] sm:$0xff] %v448
                  %v450 = vld [vmem:[%s446 + $0x8] sm:$0xff]
                  %451 = vst [vmem:[%s447 + $0x8] sm:$0xff] %v450
                  %v452 = vld [vmem:[%s446 + $0x10] sm:$0xff]
                  %453 = vst [vmem:[%s447 + $0x10] sm:$0xff] %v452
                  %v454 = vld [vmem:[%s446 + $0x18] sm:$0xff]
                  %455 = vst [vmem:[%s447 + $0x18] sm:$0xff] %v454
                  %v456 = vld [vmem:[%s446 + $0x20] sm:$0xff]
                  %457 = vst [vmem:[%s447 + $0x20] sm:$0xff] %v456
                  %v458 = vld [vmem:[%s446 + $0x28] sm:$0xff]
                  %459 = vst [vmem:[%s447 + $0x28] sm:$0xff] %v458
                  %v460 = vld [vmem:[%s446 + $0x30] sm:$0xff]
                  %461 = vst [vmem:[%s447 + $0x30] sm:$0xff] %v460
                  %v462 = vld [vmem:[%s446 + $0x38] sm:$0xff]
                  %463 = vst [vmem:[%s447 + $0x38] sm:$0xff] %v462
                  %v464 = vld [vmem:[%s446 + $0x40] sm:$0xff]
                  %465 = vst [vmem:[%s447 + $0x40] sm:$0xff] %v464
                  %v466 = vld [vmem:[%s446 + $0x48] sm:$0xff]
                  %467 = vst [vmem:[%s447 + $0x48] sm:$0xff] %v466
                  %v468 = vld [vmem:[%s446 + $0x50] sm:$0xff]
                  %469 = vst [vmem:[%s447 + $0x50] sm:$0xff] %v468
                  %v470 = vld [vmem:[%s446 + $0x58] sm:$0xff]
                  %471 = vst [vmem:[%s447 + $0x58] sm:$0xff] %v470
                  %v472 = vld [vmem:[%s446 + $0x60] sm:$0xff]
                  %473 = vst [vmem:[%s447 + $0x60] sm:$0xff] %v472
                  %v474 = vld [vmem:[%s446 + $0x68] sm:$0xff]
                  %475 = vst [vmem:[%s447 + $0x68] sm:$0xff] %v474
                  %v476 = vld [vmem:[%s446 + $0x70] sm:$0xff]
                  %477 = vst [vmem:[%s447 + $0x70] sm:$0xff] %v476
                  %v478 = vld [vmem:[%s446 + $0x78] sm:$0xff]
                  %479 = vst [vmem:[%s447 + $0x78] sm:$0xff] %v478
                  %v480 = vld [vmem:[%s446 + $0x80] sm:$0xff]
                  %481 = vst [vmem:[%s447 + $0x80] sm:$0xff] %v480
                  %v482 = vld [vmem:[%s446 + $0x88] sm:$0xff]
                  %483 = vst [vmem:[%s447 + $0x88] sm:$0xff] %v482
                  %v484 = vld [vmem:[%s446 + $0x90] sm:$0xff]
                  %485 = vst [vmem:[%s447 + $0x90] sm:$0xff] %v484
                  %v486 = vld [vmem:[%s446 + $0x98] sm:$0xff]
                  %487 = vst [vmem:[%s447 + $0x98] sm:$0xff] %v486
                  %v488 = vld [vmem:[%s446 + $0xa0] sm:$0xff]
                  %489 = vst [vmem:[%s447 + $0xa0] sm:$0xff] %v488
                  %v490 = vld [vmem:[%s446 + $0xa8] sm:$0xff]
                  %491 = vst [vmem:[%s447 + $0xa8] sm:$0xff] %v490
                  %v492 = vld [vmem:[%s446 + $0xb0] sm:$0xff]
                  %493 = vst [vmem:[%s447 + $0xb0] sm:$0xff] %v492
                  %v494 = vld [vmem:[%s446 + $0xb8] sm:$0xff]
                  %495 = vst [vmem:[%s447 + $0xb8] sm:$0xff] %v494
                  %v496 = vld [vmem:[%s446 + $0xc0] sm:$0xff]
                  %497 = vst [vmem:[%s447 + $0xc0] sm:$0xff] %v496
                  %v498 = vld [vmem:[%s446 + $0xc8] sm:$0xff]
                  %499 = vst [vmem:[%s447 + $0xc8] sm:$0xff] %v498
                  %v500 = vld [vmem:[%s446 + $0xd0] sm:$0xff]
                  %501 = vst [vmem:[%s447 + $0xd0] sm:$0xff] %v500
                  %v502 = vld [vmem:[%s446 + $0xd8] sm:$0xff]
                  %503 = vst [vmem:[%s447 + $0xd8] sm:$0xff] %v502
                  %v504 = vld [vmem:[%s446 + $0xe0] sm:$0xff]
                  %505 = vst [vmem:[%s447 + $0xe0] sm:$0xff] %v504
                  %v506 = vld [vmem:[%s446 + $0xe8] sm:$0xff]
                  %507 = vst [vmem:[%s447 + $0xe8] sm:$0xff] %v506
                  %v508 = vld [vmem:[%s446 + $0xf0] sm:$0xff]
                  %509 = vst [vmem:[%s447 + $0xf0] sm:$0xff] %v508
                  %v510 = vld [vmem:[%s446 + $0xf8] sm:$0xff]
                  %511 = vst [vmem:[%s447 + $0xf8] sm:$0xff] %v510
                  %v512 = vld [vmem:[%s446 + $0x14] sm:$0xff]
                  %513 = vst [vmem:[%s447 + $0x8] sm:$0xff] %v512
                  %v514 = vld [vmem:[%s446 + $0x1c] sm:$0xff]
                  %515 = vst [vmem:[%s447 + $0x10] sm:$0xff] %v514
                  %v516 = vld [vmem:[%s446 + $0x24] sm:$0xff]
                  %517 = vst [vmem:[%s447 + $0x18] sm:$0xff] %v516
                  %v518 = vld [vmem:[%s446 + $0x2c] sm:$0xff]
                  %519 = vst [vmem:[%s447 + $0x20] sm:$0xff] %v518
                  %v520 = vld [vmem:[%s446 + $0x34] sm:$0xff]
                  %521 = vst [vmem:[%s447 + $0x28] sm:$0xff] %v520
                  %v522 = vld [vmem:[%s446 + $0x3c] sm:$0xff]
                  %523 = vst [vmem:[%s447 + $0x30] sm:$0xff] %v522
                  %v524 = vld [vmem:[%s446 + $0x44] sm:$0xff]
                  %525 = vst [vmem:[%s447 + $0x38] sm:$0xff] %v524
                  %v526 = vld [vmem:[%s446 + $0x4c] sm:$0xff]
                  %527 = vst [vmem:[%s447 + $0x40] sm:$0xff] %v526
                  %v528 = vld [vmem:[%s446 + $0x54] sm:$0xff]
                  %529 = vst [vmem:[%s447 + $0x48] sm:$0xff] %v528
                  %v530 = vld [vmem:[%s446 + $0x5c] sm:$0xff]
                  %531 = vst [vmem:[%s447 + $0x50] sm:$0xff] %v530
                  %v532 = vld [vmem:[%s446 + $0x64] sm:$0xff]
                  %533 = vst [vmem:[%s447 + $0x58] sm:$0xff] %v532
                  %v534 = vld [vmem:[%s446 + $0x6c] sm:$0xff]
                  %535 = vst [vmem:[%s447 + $0x60] sm:$0xff] %v534
                  %v536 = vld [vmem:[%s446 + $0x74] sm:$0xff]
                  %537 = vst [vmem:[%s447 + $0x68] sm:$0xff] %v536
                  %v538 = vld [vmem:[%s446 + $0x7c] sm:$0xff]
                  %539 = vst [vmem:[%s447 + $0x70] sm:$0xff] %v538
                  %v540 = vld [vmem:[%s446 + $0x84] sm:$0xff]
                  %541 = vst [vmem:[%s447 + $0x78] sm:$0xff] %v540
                  %v542 = vld [vmem:[%s446 + $0x8c] sm:$0xff]
                  %543 = vst [vmem:[%s447 + $0x80] sm:$0xff] %v542
                  %v544 = vld [vmem:[%s446 + $0x94] sm:$0xff]
                  %545 = vst [vmem:[%s447 + $0x88] sm:$0xff] %v544
                  %v546 = vld [vmem:[%s446 + $0x9c] sm:$0xff]
                  %547 = vst [vmem:[%s447 + $0x90] sm:$0xff] %v546
                  %v548 = vld [vmem:[%s446 + $0xa4] sm:$0xff]
                  %549 = vst [vmem:[%s447 + $0x98] sm:$0xff] %v548
                  %v550 = vld [vmem:[%s446 + $0xac] sm:$0xff]
                  %551 = vst [vmem:[%s447 + $0xa0] sm:$0xff] %v550
                  %v552 = vld [vmem:[%s446 + $0xb4] sm:$0xff]
                  %553 = vst [vmem:[%s447 + $0xa8] sm:$0xff] %v552
                  %v554 = vld [vmem:[%s446 + $0xbc] sm:$0xff]
                  %555 = vst [vmem:[%s447 + $0xb0] sm:$0xff] %v554
                  %v556 = vld [vmem:[%s446 + $0xc4] sm:$0xff]
                  %557 = vst [vmem:[%s447 + $0xb8] sm:$0xff] %v556
                  %v558 = vld [vmem:[%s446 + $0xcc] sm:$0xff]
                  %559 = vst [vmem:[%s447 + $0xc0] sm:$0xff] %v558
                  %v560 = vld [vmem:[%s446 + $0xd4] sm:$0xff]
                  %561 = vst [vmem:[%s447 + $0xc8] sm:$0xff] %v560
                  %v562 = vld [vmem:[%s446 + $0xdc] sm:$0xff]
                  %563 = vst [vmem:[%s447 + $0xd0] sm:$0xff] %v562
                  %v564 = vld [vmem:[%s446 + $0xe4] sm:$0xff]
                  %565 = vst [vmem:[%s447 + $0xd8] sm:$0xff] %v564
                  %v566 = vld [vmem:[%s446 + $0xec] sm:$0xff]
                  %567 = vst [vmem:[%s447 + $0xe0] sm:$0xff] %v566
                  %v568 = vld [vmem:[%s446 + $0xf4] sm:$0xff]
                  %569 = vst [vmem:[%s447 + $0xe8] sm:$0xff] %v568
                  %v570 = vld [vmem:[%s446 + $0xfc] sm:$0xff]
                  %571 = vst [vmem:[%s447 + $0xf0] sm:$0xff] %v570
                  %v572 = vld [vmem:[%s446 + $0x104] sm:$0xff]
                  %573 = vst [vmem:[%s447 + $0xf8] sm:$0xff] %v572
                  %v574 = vld [vmem:[%s446 + $0x10c] sm:$0xff]
                  %575 = vst [vmem:[%s447 + $0x100] sm:$0xff] %v574
                  %s576 = sadd.s32 1, %s445
                  %p577 = scmp.ge.s32.totalorder %s576, %s436
                  %s578 = scalar_select %p577, 0, %s576
                  %s579 = smul.u32 %s578, 256
                  %s580 = smul.u32 %s578, 256
                  %s581 = scalar_lea.vmem %s218, %s579
                  %s582 = scalar_lea.vmem %s208, %s580 [#allocation2]
                $region78: #{conv_bn_lrelu.1} parent=72 // loop_footer
                  %s442 = sadd.s32 %s440, 1
                $region79: #{conv_bn_lrelu.1} parent=72 // loop_footer_branch
                  %439 = sbr.rel target = $region75
                $region80: #{conv_bn_lrelu.1} parent=72 // loop_exit
                  _
                %s583 = sshrl.u32 %s435, 5
                %s584 = sand.u32 %s435, 31
                %s585 = smul.u32 %s583, 32
                %s586 = smul.u32 128, %s585
                %s587 = sshra.s32 %s586, 4
                %s588 = scalar_lea.vmem %s218, %s587
                %s589 = smul.u32 128, %s585
                %s590 = sshra.s32 %s589, 4
                %s591 = scalar_lea.vmem %s208, %s590 [#allocation2]
                // While loop
                $region81: #{conv_bn_lrelu.1} parent=72 // loop_pre_header
                  _
                $region82: #{conv_bn_lrelu.1} parent=72 // loop_header
                  %s595 = sphi 0, %s597
                  %p596 = scmp.ge.s32.totalorder %s595, %s584
                  %s600 = sphi 0, %s609
                  %s601 = sphi %s588, %s612
                  %s602 = sphi %s591, %s613
                $region83: #{conv_bn_lrelu.1} parent=72 // loop_header_branch
                  %599 = sbr.rel (%p596) target = $region87
                $region84: #{conv_bn_lrelu.1} parent=72 // loop_body
                  %v603 = vld [vmem:[%s601] sm:$0xff]
                  %604 = vst [vmem:[%s602] sm:$0xff] %v603
                  %v605 = vld [vmem:[%s601 + $0x14] sm:$0xff]
                  %606 = vst [vmem:[%s602 + $0x8] sm:$0xff] %v605
                  %s607 = sadd.s32 1, %s600
                  %p608 = scmp.ge.s32.totalorder %s607, %s584
                  %s609 = scalar_select %p608, 0, %s607
                  %s610 = smul.u32 %s609, 8
                  %s611 = smul.u32 %s609, 8
                  %s612 = scalar_lea.vmem %s588, %s610
                  %s613 = scalar_lea.vmem %s591, %s611 [#allocation2]
                $region85: #{conv_bn_lrelu.1} parent=72 // loop_footer
                  %s597 = sadd.s32 %s595, 1
                $region86: #{conv_bn_lrelu.1} parent=72 // loop_footer_branch
                  %594 = sbr.rel target = $region82
                $region87: #{conv_bn_lrelu.1} parent=72 // loop_exit
                  _
                %s614 = sshllo.u32 0, %s430
                loop: start=0, step=1, limit=1
                $region88: #{conv_bn_lrelu.1} parent=72 // loop_pre_header
                  _
                $region89: #{conv_bn_lrelu.1} parent=72 // loop_header
                  %s616 = sphi 0, %s620
                  %p617 = scmp.ge.s32.totalorder %s616, 1
                  %s621 = sphi %s432, %s432
                  %s622 = sphi %s434, %s434
                $region90: #{conv_bn_lrelu.1} parent=72 // loop_header_branch
                  %619 = sbr.rel (%p617) target = $region94
                $region91: #{conv_bn_lrelu.1} parent=72 // loop_body
                  %v623 = vld [vmem:[%s621] sm:%s614]
                  %624 = vst [vmem:[%s622] sm:%s614] %v623
                  %v625 = vld [vmem:[%s621 + $0x14] sm:%s614]
                  %626 = vst [vmem:[%s622 + $0x8] sm:%s614] %v625
                $region92: #{conv_bn_lrelu.1} parent=72 // loop_footer
                  %s620 = sadd.s32 1, %s616
                $region93: #{conv_bn_lrelu.1} parent=72 // loop_footer_branch
                  %615 = sbr.rel target = $region89
                $region94: #{conv_bn_lrelu.1} parent=72 // loop_exit
                  _
              $region73: #{conv_bn_lrelu.1} parent=39 // pred_fallthru
                _
            $region40: #{conv_bn_lrelu.1} parent=35 // pred_fallthru
              _
            // Predicated region
            $region41: #{conv_bn_lrelu.1} parent=35 // pred_check
              %p227 = pneg %p223
            $region42: #{conv_bn_lrelu.1} parent=35 // pred_check_branch
              %229 = sbr.rel (%p227) target = $region44
            $region43: #{conv_bn_lrelu.1} parent=35 // pred_region
              %s230 = sshllo.u32 0, %s219
              loop: start=0, step=1, limit=1
              $region45: #{conv_bn_lrelu.1} parent=43 // loop_pre_header
                _
              $region46: #{conv_bn_lrelu.1} parent=43 // loop_header
                %s232 = sphi 0, %s236
                %p233 = scmp.ge.s32.totalorder %s232, 1
                %s237 = sphi %s218, %s218
                %s238 = sphi %s208, %s208
              $region47: #{conv_bn_lrelu.1} parent=43 // loop_header_branch
                %235 = sbr.rel (%p233) target = $region51
              $region48: #{conv_bn_lrelu.1} parent=43 // loop_body
                %v239 = vld [vmem:[%s237] sm:%s230]
                %240 = vst [vmem:[%s238] sm:%s230] %v239
                %v241 = vld [vmem:[%s237 + $0x14] sm:%s230]
                %242 = vst [vmem:[%s238 + $0x8] sm:%s230] %v241
              $region49: #{conv_bn_lrelu.1} parent=43 // loop_footer
                %s236 = sadd.s32 1, %s232
              $region50: #{conv_bn_lrelu.1} parent=43 // loop_footer_branch
                %231 = sbr.rel target = $region46
              $region51: #{conv_bn_lrelu.1} parent=43 // loop_exit
                _
            $region44: #{conv_bn_lrelu.1} parent=35 // pred_fallthru
              _
          $region36: #{conv_bn_lrelu.1} parent=31 // pred_fallthru
            _
          %627 = vnop
        $region32: #{conv_bn_lrelu.1} parent=27 // pred_fallthru
          _
        // Predicated region
        $region95: #{conv_bn_lrelu.1} parent=27 // pred_check
          %p628 = pneg %p77
        $region96: #{conv_bn_lrelu.1} parent=27 // pred_check_branch
          %630 = sbr.rel (%p628) target = $region98
        $region97: #{conv_bn_lrelu.1} parent=27 // pred_region
          %s631 = sand.u32 %s67, 1
          %s632 = sand.u32 %s67, 1
          %s633 = smul.addr %s632, 8
          %s634 = scalar_lea.vmem [#allocation3], %s633
          %s635 = sadd.s32 %s19, 1
          %s636 = smul.u32 %s635, 2
          %s637 = smul.addr %s18, 10
          %s638 = sadd.s32 %s636, %s637
          %s639 = smul.addr %s638, 4
          %s640 = scalar_lea.vmem %s1, %s639
          // Predicated region
          $region99: #{conv_bn_lrelu.1} parent=97 // pred_check
            _
          $region100: #{conv_bn_lrelu.1} parent=97 // pred_check_branch
            %642 = sbr.rel (0) target = $region102
          $region101: #{conv_bn_lrelu.1} parent=97 // pred_region
            // Predicated region
            $region103: #{conv_bn_lrelu.1} parent=101 // pred_check
              _
            $region104: #{conv_bn_lrelu.1} parent=101 // pred_check_branch
              %644 = sbr.rel target = $region106
            $region105: #{conv_bn_lrelu.1} parent=101 // pred_region
              // Predicated region
              $region118: #{conv_bn_lrelu.1} parent=105 // pred_check
                _
              $region119: #{conv_bn_lrelu.1} parent=105 // pred_check_branch
                %661 = sbr.rel (0) target = $region121
              $region120: #{conv_bn_lrelu.1} parent=105 // pred_region
                loop: start=0, step=1, limit=1
                $region122: #{conv_bn_lrelu.1} parent=120 // loop_pre_header
                  _
                $region123: #{conv_bn_lrelu.1} parent=120 // loop_header
                  %s663 = sphi 0, %s667
                  %p664 = scmp.ge.s32.totalorder %s663, 1
                  %s668 = sphi %s640, %s640
                  %s669 = sphi %s634, %s634
                $region124: #{conv_bn_lrelu.1} parent=120 // loop_header_branch
                  %666 = sbr.rel (%p664) target = $region128
                $region125: #{conv_bn_lrelu.1} parent=120 // loop_body
                  _
                $region126: #{conv_bn_lrelu.1} parent=120 // loop_footer
                  %s667 = sadd.s32 1, %s663
                $region127: #{conv_bn_lrelu.1} parent=120 // loop_footer_branch
                  %662 = sbr.rel target = $region123
                $region128: #{conv_bn_lrelu.1} parent=120 // loop_exit
                  _
                loop: start=0, step=1, limit=1
                $region129: #{conv_bn_lrelu.1} parent=120 // loop_pre_header
                  _
                $region130: #{conv_bn_lrelu.1} parent=120 // loop_header
                  %s672 = sphi 0, %s676
                  %p673 = scmp.ge.s32.totalorder %s672, 1
                  %s677 = sphi %s640, %s640
                  %s678 = sphi %s634, %s634
                $region131: #{conv_bn_lrelu.1} parent=120 // loop_header_branch
                  %675 = sbr.rel (%p673) target = $region135
                $region132: #{conv_bn_lrelu.1} parent=120 // loop_body
                  %v679 = vld [vmem:[%s677] sm:$0xf]
                  %680 = vst [vmem:[%s678] sm:$0xf] %v679
                  %v681 = vld [vmem:[%s677 + $0x14] sm:$0xf]
                  %682 = vst [vmem:[%s678 + $0x4] sm:$0xf] %v681
                $region133: #{conv_bn_lrelu.1} parent=120 // loop_footer
                  %s676 = sadd.s32 1, %s672
                $region134: #{conv_bn_lrelu.1} parent=120 // loop_footer_branch
                  %671 = sbr.rel target = $region130
                $region135: #{conv_bn_lrelu.1} parent=120 // loop_exit
                  _
              $region121: #{conv_bn_lrelu.1} parent=105 // pred_fallthru
                _
            $region106: #{conv_bn_lrelu.1} parent=101 // pred_fallthru
              _
            // Predicated region
            $region107: #{conv_bn_lrelu.1} parent=101 // pred_check
              _
            $region108: #{conv_bn_lrelu.1} parent=101 // pred_check_branch
              %646 = sbr.rel (0) target = $region110
            $region109: #{conv_bn_lrelu.1} parent=101 // pred_region
              loop: start=0, step=1, limit=1
              $region111: #{conv_bn_lrelu.1} parent=109 // loop_pre_header
                _
              $region112: #{conv_bn_lrelu.1} parent=109 // loop_header
                %s649 = sphi 0, %s653
                %p650 = scmp.ge.s32.totalorder %s649, 1
                %s654 = sphi %s640, %s640
                %s655 = sphi %s634, %s634
              $region113: #{conv_bn_lrelu.1} parent=109 // loop_header_branch
                %652 = sbr.rel (%p650) target = $region117
              $region114: #{conv_bn_lrelu.1} parent=109 // loop_body
                %v656 = vld [vmem:[%s654] sm:$0xf]
                %657 = vst [vmem:[%s655] sm:$0xf] %v656
                %v658 = vld [vmem:[%s654 + $0x14] sm:$0xf]
                %659 = vst [vmem:[%s655 + $0x4] sm:$0xf] %v658
              $region115: #{conv_bn_lrelu.1} parent=109 // loop_footer
                %s653 = sadd.s32 1, %s649
              $region116: #{conv_bn_lrelu.1} parent=109 // loop_footer_branch
                %648 = sbr.rel target = $region112
              $region117: #{conv_bn_lrelu.1} parent=109 // loop_exit
                _
            $region110: #{conv_bn_lrelu.1} parent=101 // pred_fallthru
              _
          $region102: #{conv_bn_lrelu.1} parent=97 // pred_fallthru
            _
          %683 = vnop
        $region98: #{conv_bn_lrelu.1} parent=27 // pred_fallthru
          _
      $region28: #{conv_bn_lrelu.1} parent=5 // pred_fallthru
        _
      %p684 = scmp.le.s32.totalorder 1, %s11
      %p685 = scmp.lt.s32.totalorder %s11, 5
      %p686 = pnand %p684, %p685
      %p687 = pneg %p686
      // Predicated region
      $region136: #{conv_bn_lrelu.1} parent=5 // pred_check
        _
      $region137: #{conv_bn_lrelu.1} parent=5 // pred_check_branch
        %689 = sbr.rel (%p686) target = $region139
      $region138: #{conv_bn_lrelu.1} parent=5 // pred_region
        %s690 = ssub.s32 %s11, 1
        %s691 = sand.u32 %s38, 1
        %s692 = sand.u32 %s38, 1
        %s693 = smul.addr %s692, 16
        %s694 = scalar_lea.vmem [#allocation2], %s693
        // Predicated region
        $region140: #{conv_bn_lrelu.1} parent=138 // pred_check
          %p695 = pneg %p51
        $region141: #{conv_bn_lrelu.1} parent=138 // pred_check_branch
          %697 = sbr.rel (%p695) target = $region143
        $region142: #{conv_bn_lrelu.1} parent=138 // pred_region
          _
        $region143: #{conv_bn_lrelu.1} parent=138 // pred_fallthru
          _
        %s698 = sand.u32 %s70, 1
        %s699 = sand.u32 %s70, 1
        %s700 = smul.addr %s699, 8
        %s701 = scalar_lea.vmem [#allocation3], %s700
        // Predicated region
        $region144: #{conv_bn_lrelu.1} parent=138 // pred_check
          %p702 = pneg %p83
        $region145: #{conv_bn_lrelu.1} parent=138 // pred_check_branch
          %704 = sbr.rel (%p702) target = $region147
        $region146: #{conv_bn_lrelu.1} parent=138 // pred_region
          _
        $region147: #{conv_bn_lrelu.1} parent=138 // pred_fallthru
          _
        %s705 = sand.u32 %s38, 1
        %s706 = sand.u32 %s38, 1
        %s707 = smul.addr %s706, 16
        %s708 = scalar_lea.vmem [#allocation2], %s707
        %p709 = pneg %p51
        %p710 = pneg %p48
        %s711 = sand.u32 %s70, 1
        %s712 = sand.u32 %s70, 1
        %s713 = smul.addr %s712, 8
        %s714 = scalar_lea.vmem [#allocation3], %s713
        %p715 = pneg %p83
        %p716 = pneg %p80
        %p717 = pneg %p104
        %p718 = pneg %p101
        %p719 = pneg %p125
        %p720 = pneg %p122
        %p721 = pneg %p146
        %p722 = pneg %p143
        %p723 = pneg %p174
        %p724 = pneg %p171
        %s725 = smul.u32 2, %s21
        %p726 = scmp.lt.s32.totalorder %s20, 1
        %s727 = scalar_select %p726, %s20, 1
        %p728 = scmp.lt.s32.totalorder %s725, 3
        %s729 = scalar_select %p728, %s725, 3
        %s730 = smul.addr %s727, 4
        %s731 = sadd.s32 %s729, %s730
        %s732 = smul.addr %s731, 8
        %s733 = scalar_lea.vmem %s5, %s732
        %s734 = smul.u32 2, %s21
        %s735 = ssub.s32 5, %s734
        %p736 = scmp.lt.s32.totalorder %s735, 2
        %s737 = scalar_select %p736, %s735, 2
        %s738 = smul.u32 128, %s737
        %s739 = sadd.s32 %s21, 1
        %s740 = smul.u32 %s739, 2
        %s741 = smul.u32 2, %s21
        %p742 = scmp.lt.s32.totalorder %s20, 1
        %s743 = scalar_select %p742, %s20, 1
        %p744 = scmp.lt.s32.totalorder %s741, 3
        %s745 = scalar_select %p744, %s741, 3
        %s746 = smul.addr %s743, 4
        %s747 = sadd.s32 %s745, %s746
        %s748 = smul.addr %s747, 8
        %s749 = scalar_lea.vmem %s5, %s748
        %s750 = smul.u32 2, %s21
        %v752 = vld [vmem:[%s694] sm:$0xff]
        %v753 = vld [vmem:[%s694 + $0x8] sm:$0xff]
        %v754 = vld [vmem:[%s701] sm:$0xf]
        %v755 = vld [vmem:[%s701 + $0x4] sm:$0xf]
        %v758 = vunpack.c.l.b16 %v752
        %v759 = vunpack.c.h.b16 %v752
        %v760 = vunpack.c.l.b16 %v753
        %v761 = vunpack.c.h.b16 %v753
        %v762 = vpack.c.b16 %v760, %v758
        %v763 = vpack.c.b16 %v761, %v759
        %v768 = vunpack.c.l.b16 %v754
        %v769 = vunpack.c.l.b16 %v755
        %v770 = vpack.c.b16 %v769, %v768
        %771 = vrot.lane.b32.xlu0 %v762, 127
        %v772 = vpop.permute.xlu0 %771
        %773 = vrot.lane.b32.xlu0 %v763, 127
        %v774 = vpop.permute.xlu0 %773
        %775 = vrot.lane.b32.xlu0 %v770, 127
        %v776 = vpop.permute.xlu0 %775
        %vm777 = vcmask 1039360
        %v778 = vsel %vm777, %v772, %v774
        %v779 = vsel %vm777, %v774, %v776
        %782 = vrot.lane.b32.xlu0 %v762, 126
        %v783 = vpop.permute.xlu0 %782
        %784 = vrot.lane.b32.xlu0 %v763, 126
        %v785 = vpop.permute.xlu0 %784
        %786 = vrot.lane.b32.xlu0 %v770, 126
        %v787 = vpop.permute.xlu0 %786
        %vm788 = vcmask 1031168
        %v789 = vsel %vm788, %v783, %v785
        %v790 = vsel %vm788, %v785, %v787
        %793 = vrot.lane.b32.xlu0 %v762, 110
        %v794 = vpop.permute.xlu0 %793
        %795 = vrot.lane.b32.xlu0 %v763, 110
        %v796 = vpop.permute.xlu0 %795
        %797 = vrot.lane.b32.xlu0 %v770, 110
        %v798 = vpop.permute.xlu0 %797
        %vm799 = vcmask 900096
        %v800 = vsel %vm799, %v794, %v796
        %v801 = vsel %vm799, %v796, %v798
        %804 = vrot.lane.b32.xlu0 %v762, 109
        %v805 = vpop.permute.xlu0 %804
        %806 = vrot.lane.b32.xlu0 %v763, 109
        %v807 = vpop.permute.xlu0 %806
        %808 = vrot.lane.b32.xlu0 %v770, 109
        %v809 = vpop.permute.xlu0 %808
        %vm810 = vcmask 891904
        %v811 = vsel %vm810, %v805, %v807
        %v812 = vsel %vm810, %v807, %v809
        %815 = vrot.lane.b32.xlu0 %v762, 108
        %v816 = vpop.permute.xlu0 %815
        %817 = vrot.lane.b32.xlu0 %v763, 108
        %v818 = vpop.permute.xlu0 %817
        %819 = vrot.lane.b32.xlu0 %v770, 108
        %v820 = vpop.permute.xlu0 %819
        %vm821 = vcmask 883712
        %v822 = vsel %vm821, %v816, %v818
        %v823 = vsel %vm821, %v818, %v820
        %826 = vrot.lane.b32.xlu0 %v762, 92
        %v827 = vpop.permute.xlu0 %826
        %828 = vrot.lane.b32.xlu0 %v763, 92
        %v829 = vpop.permute.xlu0 %828
        %830 = vrot.lane.b32.xlu0 %v770, 92
        %v831 = vpop.permute.xlu0 %830
        %vm832 = vcmask 752640
        %v833 = vsel %vm832, %v827, %v829
        %v834 = vsel %vm832, %v829, %v831
        %837 = vrot.lane.b32.xlu0 %v762, 91
        %v838 = vpop.permute.xlu0 %837
        %839 = vrot.lane.b32.xlu0 %v763, 91
        %v840 = vpop.permute.xlu0 %839
        %841 = vrot.lane.b32.xlu0 %v770, 91
        %v842 = vpop.permute.xlu0 %841
        %vm843 = vcmask 744448
        %v844 = vsel %vm843, %v838, %v840
        %v845 = vsel %vm843, %v840, %v842
        %848 = vrot.lane.b32.xlu0 %v762, 90
        %v849 = vpop.permute.xlu0 %848
        %850 = vrot.lane.b32.xlu0 %v763, 90
        %v851 = vpop.permute.xlu0 %850
        %852 = vrot.lane.b32.xlu0 %v770, 90
        %v853 = vpop.permute.xlu0 %852
        %vm854 = vcmask 736256
        %v855 = vsel %vm854, %v849, %v851
        %v856 = vsel %vm854, %v851, %v853
        %v859 = vld [vmem:[%s2] sm:$0xff]
        %v861 = vunpack.c.l.b16 %v859
        %v862 = vunpack.c.h.b16 %v859
        %v863 = vpack.c.b16 %v861, %v861
        %v864 = vpack.c.b16 %v862, %v862
        %vm866 = vcmask 130048
        %v868 = vsel %vm866, %v864, 0
        %870 = vmatprep.subr.bf16.mxu0 %v763
        %871 = vmatpush1.bf16.msra.mxu0 %v762
        %872 = vmatprep.subr.bf16.mxu0 %v779
        %873 = vmatpush1.bf16.msra.mxu0 %v778
        %874 = vmatprep.subr.bf16.mxu0 %v790
        %875 = vmatpush1.bf16.msra.mxu0 %v789
        %876 = vmatprep.subr.bf16.mxu0 %v801
        %877 = vmatpush1.bf16.msra.mxu0 %v800
        %878 = vmatprep.subr.bf16.mxu0 %v812
        %879 = vmatpush1.bf16.msra.mxu0 %v811
        %880 = vmatprep.subr.bf16.mxu0 %v823
        %881 = vmatpush1.bf16.msra.mxu0 %v822
        %882 = vmatprep.subr.bf16.mxu0 %v834
        %883 = vmatpush1.bf16.msra.mxu0 %v833
        %884 = vmatprep.subr.bf16.mxu0 %v845
        %885 = vmatpush1.bf16.msra.mxu0 %v844
        %886 = vmatprep.subr.bf16.mxu0 %v856
        %887 = vmatpush1.bf16.msra.mxu0 %v855
        %888 = vmatprep.subr.bf16.mxu0 0
        %889 = vmatpush1.bf16.msra.mxu0 0
        %890 = vmatprep.subr.bf16.mxu0 0
        %891 = vmatpush1.bf16.msra.mxu0 0
        %892 = vmatprep.subr.bf16.mxu0 0
        %893 = vmatpush1.bf16.msra.mxu0 0
        %894 = vmatprep.subr.bf16.mxu0 0
        %895 = vmatpush1.bf16.msra.mxu0 0
        %896 = vmatprep.subr.bf16.mxu0 0
        %897 = vmatpush1.bf16.msra.mxu0 0
        %898 = vmatprep.subr.bf16.mxu0 0
        %899 = vmatpush1.bf16.msra.mxu0 0
        %900 = vmatprep.subr.bf16.mxu0 0
        %901 = vmatpush1.bf16.msra.mxu0 0
        %902 = vmatprep.mubr.bf16.mxu0 %v868
        %903 = vmatmul.mubr.bf16.gmra.mrb[0].mxu0 %v863
        %v904 = vpop.f32.mrb[0].mxu0
        %v905 = vadd.f32 0.0, %v904
        %v906 = vpop.f32.mrb[0].mxu0
        %v907 = vadd.f32 0.0, %v906
        %v908 = vpop.f32.mrb[0].mxu0
        %v909 = vpop.f32.mrb[0].mxu0
        %910 = vdwg.mxu0
        %v911 = vld [vmem:[%s3] sm:$0xff]
        %913 = vset.pattern.permute.xlu0 0
        %914 = vperm.xlu0 %913, %v911
        %v915 = vpop.permute.xlu0 %914
        %v917 = vmul.f32 %v905, %v915
        %v918 = vmul.f32 %v907, %v915
        %v919 = vld [vmem:[%s4] sm:$0xff]
        %921 = vset.pattern.permute.xlu0 0
        %922 = vperm.xlu0 %921, %v919
        %v923 = vpop.permute.xlu0 %922
        %v925 = vadd.f32 %v917, %v923
        %v926 = vadd.f32 %v918, %v923
        %vm927 = vcmp.gt.f32.partialorder %v925, 0.0
        %vm928 = vcmp.gt.f32.partialorder %v926, 0.0
        %v929 = vmul.f32 %v925, 0.2
        %v930 = vmul.f32 %v926, 0.2
        %v931 = vsel %vm927, %v925, %v929
        %v932 = vsel %vm928, %v926, %v930
        %933 = vst [vmem:[%s749] sm:$0xff] %v931
        %934 = vst [vmem:[%s749 + $0x8] sm:$0xff] %v932
        %s935 = smul.u32 2, %s21
        %p936 = scmp.lt.s32.totalorder %s20, 1
        %s937 = scalar_select %p936, %s20, 1
        %p938 = scmp.lt.s32.totalorder %s935, 3
        %s939 = scalar_select %p938, %s935, 3
        %s940 = smul.addr %s937, 4
        %s941 = sadd.s32 %s939, %s940
        %s942 = smul.addr %s941, 8
        %s943 = scalar_lea.vmem %s5, %s942
        // Predicated region
        $region148: #{conv_bn_lrelu.1} parent=138 // pred_check
          %p944 = pneg %p171
        $region149: #{conv_bn_lrelu.1} parent=138 // pred_check_branch
          %946 = sbr.rel (%p944) target = $region151
        $region150: #{conv_bn_lrelu.1} parent=138 // pred_region
          %s947 = smul.u32 2, %s21
        $region151: #{conv_bn_lrelu.1} parent=138 // pred_fallthru
          _
      $region139: #{conv_bn_lrelu.1} parent=5 // pred_fallthru
        _
      %p948 = scmp.le.s32.totalorder 2, %s11
      // Predicated region
      $region152: #{conv_bn_lrelu.1} parent=5 // pred_check
        %p949 = pneg %p948
      $region153: #{conv_bn_lrelu.1} parent=5 // pred_check_branch
        %951 = sbr.rel (%p949) target = $region155
      $region154: #{conv_bn_lrelu.1} parent=5 // pred_region
        %s952 = ssub.s32 %s11, 2
        // Predicated region
        $region156: #{conv_bn_lrelu.1} parent=154 // pred_check
          %p953 = pneg %p177
        $region157: #{conv_bn_lrelu.1} parent=154 // pred_check_branch
          %955 = sbr.rel (%p953) target = $region159
        $region158: #{conv_bn_lrelu.1} parent=154 // pred_region
          %s956 = smul.u32 2, %s23
          %p957 = scmp.lt.s32.totalorder %s22, 1
          %s958 = scalar_select %p957, %s22, 1
          %p959 = scmp.lt.s32.totalorder %s956, 3
          %s960 = scalar_select %p959, %s956, 3
          %s961 = smul.addr %s958, 4
          %s962 = sadd.s32 %s960, %s961
          %s963 = smul.addr %s962, 8
          %s964 = scalar_lea.vmem %s5, %s963
        $region159: #{conv_bn_lrelu.1} parent=154 // pred_fallthru
          _
      $region155: #{conv_bn_lrelu.1} parent=5 // pred_fallthru
        _
    $region6: #{conv_bn_lrelu.1} parent=1 // loop_footer
      %s15 = sadd.s32 1, %s11
    $region7: #{conv_bn_lrelu.1} parent=1 // loop_footer_branch
      %10 = sbr.rel target = $region3
    $region8: #{conv_bn_lrelu.1} parent=1 // loop_exit
      _

</llo_original>
